<compile_context>
chip_gen: v7x
topology: tpu7x:2x2x1
jax: 0.10.0
libtpu: 0.0.40
codegen_flags: <defaults>
</compile_context>

<pallas_src>
import jax
import jax.numpy as jnp
from jax import lax
from jax.experimental import pallas as pl
from jax.experimental.pallas import tpu as pltpu


def _round_up(x, m):
    return ((x + m - 1) // m) * m


# ----------------------------------------------------------------------------
# Kernel: one (row_tile, col_tile, k_tile) step of  out = x @ W.T + b
# ----------------------------------------------------------------------------
def flatten_head_kernel(x_ref, w_ref, b_ref, o_ref, acc_ref):
    # x_ref: (bm, tk)  w_ref: (tn, tk)  b_ref: (1, tn)  o_ref: (bm, tn)  acc_ref: f32 (bm, tn)
    k = pl.program_id(2)

    @pl.when(k == 0)
    def _():
        acc_ref[...] = jnp.zeros_like(acc_ref)

    # Contract both operands over their LAST axis -> (bm, tn); keeping the PyTorch
    # (target_window, nf) weight layout avoids any transpose op in the hot path.
    acc_ref[...] += lax.dot_general(
        x_ref[...], w_ref[...],
        dimension_numbers=(((1,), (1,)), ((), ())),
        preferred_element_type=jnp.float32,
    )

    # Bias add + cast only in the finalize step (correct under K-tiling, off the
    # steady-state inner loop).
    @pl.when(k == pl.num_programs(2) - 1)
    def _():
        o_ref[...] = (acc_ref[...] + b_ref[...]).astype(o_ref.dtype)


# ----------------------------------------------------------------------------
# Wrapper: flatten (free reshape) + tiled fused linear.  Dropout: identity (eval).
# ----------------------------------------------------------------------------
def flatten_head(x, weight, bias, *, block_rows=None, block_cols=None, block_k=None,
                 compute_dtype=jnp.bfloat16):
    """x: (bs, n_vars, d_model, patch_num); weight: (target_window, nf); bias: (target_window,)."""
    bs, n_vars, d_model, patch_num = x.shape
    nf = d_model * patch_num
    tw = weight.shape[0]
    assert weight.shape == (tw, nf)
    out_dtype = x.dtype

    # Flatten(start_dim=-2) merges the two trailing contiguous dims (free row-major
    # reshape); also fold (bs, n_vars) into one big row axis.
    M = bs * n_vars
    x2 = x.reshape(M, nf).astype(compute_dtype)
    w2 = weight.astype(compute_dtype)                 # PyTorch layout kept: (tw, nf)
    b2 = bias.astype(jnp.float32).reshape(1, tw)      # bias stays f32 (tiny)

    # ---- tile sizes --------------------------------------------------------
    sub = 16 if jnp.dtype(compute_dtype).itemsize == 2 else 8
    if block_rows is None:
        block_rows = min(_round_up(M, sub), 256)
    else:
        block_rows = _round_up(block_rows, sub)
    block_cols = _round_up(min(block_cols or max(tw, 128), 512), 128)
    block_k = _round_up(min(block_k or max(nf, 128), 512), 128)

    # Zero-pad K (nf) and N (target_window) so tiles divide evenly and the output's
    # lane axis is a dense multiple of 128 (unmasked vst).  Zero padding is exact.
    nf_p = _round_up(nf, block_k)
    tw_p = _round_up(tw, block_cols)
    if nf_p != nf:
        x2 = jnp.pad(x2, ((0, 0), (0, nf_p - nf)))
        w2 = jnp.pad(w2, ((0, 0), (0, nf_p - nf)))
    if tw_p != tw:
        w2 = jnp.pad(w2, ((0, tw_p - tw), (0, 0)))    # padded output columns are zero
        b2 = jnp.pad(b2, ((0, 0), (0, tw_p - tw)))

    grid = (pl.cdiv(M, block_rows), tw_p // block_cols, nf_p // block_k)

    # VMEM budget: 2x (double-buffered) streamed blocks + resident f32 accumulator.
    cbytes = jnp.dtype(compute_dtype).itemsize
    est = (2 * (block_rows * block_k + block_cols * block_k) * cbytes
           + 2 * block_rows * block_cols * jnp.dtype(out_dtype).itemsize
           + 2 * block_cols * 4
           + block_rows * block_cols * 4)
    vmem_limit = int(min(48 * 1024 * 1024, max(4 * 1024 * 1024, 2 * est)))

    out = pl.pallas_call(
        flatten_head_kernel,
        grid=grid,
        in_specs=[
            pl.BlockSpec((block_rows, block_k), lambda i, j, k: (i, k)),   # x rows / K
            pl.BlockSpec((block_cols, block_k), lambda i, j, k: (j, k)),   # W cols / K
            pl.BlockSpec((1, block_cols), lambda i, j, k: (0, j)),         # bias cols
        ],
        out_specs=pl.BlockSpec((block_rows, block_cols), lambda i, j, k: (i, j)),
        out_shape=jax.ShapeDtypeStruct((M, tw_p), out_dtype),
        scratch_shapes=[pltpu.VMEM((block_rows, block_cols), jnp.float32)],
        compiler_params=pltpu.CompilerParams(
            # rows and output-columns are independent -> shardable across v7x's 2 TCs
            # (column split halves per-core weight traffic); K reduction is last/arbitrary.
            dimension_semantics=("parallel", "parallel", "arbitrary"),
            vmem_limit_bytes=vmem_limit,
        ),
    )(x2, w2, b2)

    # Dropout is identity in eval mode.  TODO(synk): add RNG dropout mask for training mode.
    return out[:, :tw].reshape(bs, n_vars, tw)


if __name__ == "__main__":
    key = jax.random.PRNGKey(0)
    k_x, k_w, k_b = jax.random.split(key, 3)

    # Small, module-consistent shapes: nf = d_model * patch_num; target_window deliberately
    # NOT a multiple of 128 so the lane-padding path is exercised.
    bs, n_vars, d_model, patch_num = 2, 4, 32, 8
    nf = d_model * patch_num            # 256
    target_window = 192

    x = jax.random.normal(k_x, (bs, n_vars, d_model, patch_num), jnp.float32)
    weight = 0.05 * jax.random.normal(k_w, (target_window, nf), jnp.float32)
    bias = 0.05 * jax.random.normal(k_b, (target_window,), jnp.float32)

    # Force a multi-tile grid (2 K tiles, 2 column tiles) so the accumulate/finalize
    # path is exercised even at these tiny shapes.
    out = flatten_head(x, weight, bias, block_cols=128, block_k=128)
    jax.block_until_ready(out)

    # Pure-JAX reference at matching precision: bf16 inputs, f32 accumulation
    # (bf16*bf16 products are exact in f32, so this matches the MXU result).
    x_c = x.astype(jnp.bfloat16).astype(jnp.float32)
    w_c = weight.astype(jnp.bfloat16).astype(jnp.float32)
    ref = x_c.reshape(bs, n_vars, nf) @ w_c.T + bias

    assert out.shape == (bs, n_vars, target_window)
    assert jnp.allclose(out, ref, atol=1e-4, rtol=1e-4), float(jnp.max(jnp.abs(out - ref)))

    print("KERNEL_OK")
</pallas_src>

<mosaic_0001>
module attributes {stable_mosaic.version = 11 : i64} {
  func.func @flatten_head_kernel(%arg0: i32, %arg1: i32, %arg2: i32, %arg3: memref<16x128xbf16, #tpu.memory_space<vmem>>, %arg4: memref<128x128xbf16, #tpu.memory_space<vmem>>, %arg5: memref<1x128xf32, #tpu.memory_space<vmem>>, %arg6: memref<16x128xf32, #tpu.memory_space<vmem>>, %arg7: memref<16x128xf32, #tpu.memory_space<vmem>>) attributes {dimension_semantics = [#tpu.dimension_semantics<parallel>, #tpu.dimension_semantics<parallel>, #tpu.dimension_semantics<arbitrary>], iteration_bounds = array<i64: 1, 2, 2>, scalar_prefetch = 0 : i64, scratch_operands = 1 : i64, tpu.core_type = #tpu.core_type<tc>, window_params = [{transform_indices = @transform_0, window_bounds = array<i64: 16, 128>}, {transform_indices = @transform_1, window_bounds = array<i64: 128, 128>}, {transform_indices = @transform_2, window_bounds = array<i64: 1, 128>}, {transform_indices = @transform_3, window_bounds = array<i64: 16, 128>}]} {
    %c0_i32 = arith.constant 0 : i32
    %0 = arith.cmpi eq, %arg2, %c0_i32 : i32
    %1 = arith.extui %0 : i1 to i32
    %c0_i32_0 = arith.constant 0 : i32
    %2 = arith.cmpi ne, %1, %c0_i32_0 : i32
    scf.if %2 {
      %cst_9 = arith.constant 0.000000e+00 : f32
      %12 = vector.broadcast %cst_9 : f32 to vector<16x128xf32>
      %c0_10 = arith.constant 0 : index
      %c0_11 = arith.constant 0 : index
      %13 = vector.load %arg7[%c0_10, %c0_11] : memref<16x128xf32, #tpu.memory_space<vmem>>, vector<16x128xf32>
      tpu.vector_store %arg7[%c0_10, %c0_11], %12 {strides = array<i32>} : memref<16x128xf32, #tpu.memory_space<vmem>>, vector<16x128xf32>,
    } else {
    }
    %c0 = arith.constant 0 : index
    %c0_1 = arith.constant 0 : index
    %3 = vector.load %arg7[%c0, %c0_1] : memref<16x128xf32, #tpu.memory_space<vmem>>, vector<16x128xf32>
    %c0_2 = arith.constant 0 : index
    %c0_3 = arith.constant 0 : index
    %4 = vector.load %arg3[%c0_2, %c0_3] : memref<16x128xbf16, #tpu.memory_space<vmem>>, vector<16x128xbf16>
    %c0_4 = arith.constant 0 : index
    %c0_5 = arith.constant 0 : index
    %5 = vector.load %arg4[%c0_4, %c0_5] : memref<128x128xbf16, #tpu.memory_space<vmem>>, vector<128x128xbf16>
    %cst = arith.constant dense<0.000000e+00> : vector<16x128xf32>
    %6 = tpu.matmul %4, %5, %cst {dimension_numbers = #tpu.dot_dimension_numbers<[1], [1], [0], [0], [0, 0, 1, 0], [], []>} : vector<16x128xbf16>, vector<128x128xbf16>, vector<16x128xf32> -> vector<16x128xf32>
    %7 = arith.addf %3, %6 : vector<16x128xf32>
    %c0_6 = arith.constant 0 : index
    %c0_7 = arith.constant 0 : index
    %8 = vector.load %arg7[%c0_6, %c0_7] : memref<16x128xf32, #tpu.memory_space<vmem>>, vector<16x128xf32>
    tpu.vector_store %arg7[%c0_6, %c0_7], %7 {strides = array<i32>} : memref<16x128xf32, #tpu.memory_space<vmem>>, vector<16x128xf32>,
    %c1_i32 = arith.constant 1 : i32
    %9 = arith.cmpi eq, %arg2, %c1_i32 : i32
    %10 = arith.extui %9 : i1 to i32
    %c0_i32_8 = arith.constant 0 : i32
    %11 = arith.cmpi ne, %10, %c0_i32_8 : i32
    scf.if %11 {
      %c0_9 = arith.constant 0 : index
      %c0_10 = arith.constant 0 : index
      %12 = vector.load %arg7[%c0_9, %c0_10] : memref<16x128xf32, #tpu.memory_space<vmem>>, vector<16x128xf32>
      %c0_11 = arith.constant 0 : index
      %c0_12 = arith.constant 0 : index
      %13 = vector.load %arg5[%c0_11, %c0_12] : memref<1x128xf32, #tpu.memory_space<vmem>>, vector<1x128xf32>
      %14 = vector.broadcast %13 : vector<1x128xf32> to vector<16x128xf32>
      %15 = arith.addf %12, %14 : vector<16x128xf32>
      %c0_13 = arith.constant 0 : index
      %c0_14 = arith.constant 0 : index
      %16 = vector.load %arg6[%c0_13, %c0_14] : memref<16x128xf32, #tpu.memory_space<vmem>>, vector<16x128xf32>
      tpu.vector_store %arg6[%c0_13, %c0_14], %15 {strides = array<i32>} : memref<16x128xf32, #tpu.memory_space<vmem>>, vector<16x128xf32>,
    } else {
    }
    return
  }
  func.func @transform_0(%arg0: i32, %arg1: i32, %arg2: i32) -> (i32, i32) {
    %c0_i32 = arith.constant 0 : i32
    return %arg0, %arg2 : i32, i32
  }
  func.func @transform_1(%arg0: i32, %arg1: i32, %arg2: i32) -> (i32, i32) {
    %c0_i32 = arith.constant 0 : i32
    return %arg1, %arg2 : i32, i32
  }
  func.func @transform_2(%arg0: i32, %arg1: i32, %arg2: i32) -> (i32, i32) {
    %c0_i32 = arith.constant 0 : i32
    %c0_i32_0 = arith.constant 0 : i32
    return %c0_i32, %arg1 : i32, i32
  }
  func.func @transform_3(%arg0: i32, %arg1: i32, %arg2: i32) -> (i32, i32) {
    %c0_i32 = arith.constant 0 : i32
    return %arg0, %arg1 : i32, i32
  }
}

</mosaic_0001>

<llo_original>
// kernel: tpu_custom_call.1
$region0: #{tpu_custom_call.1}
  #allocation0 [shape = 'u32[]', space=smem, size = 0x4, offset = 0x4, fixed_abs, tag = 'smem constant byte address 0x4 - core index']
  #allocation1 [shape = 'u32[144,128]{1,0:T(1,128)}', space=vmem, size = 0x12000, scoped, tag = 'internal scratch']
  #allocation2 [shape = 'f32[16,128]{1,0:T(8,128)}', space=vmem, size = 0x2000, scoped, tag = 'scratch operand']
  %s0 = inlined_call_operand.hbm [shape: bf16[8,256], index: 0, kind: input, shape index: {}]
  %s1 = inlined_call_operand.hbm [shape: bf16[256,256], index: 1, kind: input, shape index: {}]
  %s2 = inlined_call_operand.vmem [shape: f32[1,256], index: 2, kind: input, shape index: {}]
  %s3 = inlined_call_operand.hbm [shape: f32[8,256], index: 3, kind: output, shape index: {}]
  %s4 = sld [smem:[#allocation0]]
  $region61: #{tpu_custom_call.1} parent=0
    _
  %s6 = ssub.s32 1, %s4
  %s7 = scalar_select 0, %s6, %s4
  $region1: #{tpu_custom_call.1} parent=0
    #allocation3 [shape = 'u8[8192]{0}', space=vmem, size = 0x2000, scoped, tag = 'input window, operand 0']
    #allocation4 [shape = 's32[2]{0}', space=sflag, size = 0x8, scoped, tag = 'scoped memory for tpu_custom_call.1']
    #allocation5 [shape = 's32[2]{0}', space=sflag, size = 0x8, scoped, tag = 'scoped memory for tpu_custom_call.1']
    #allocation6 [shape = 'u8[65536]{0}', space=vmem, size = 0x10000, scoped, tag = 'input window, operand 1']
    #allocation7 [shape = 's32[2]{0}', space=sflag, size = 0x8, scoped, tag = 'scoped memory for tpu_custom_call.1']
    #allocation8 [shape = 'u8[16384]{0}', space=vmem, size = 0x4000, scoped, tag = 'output window, operand 0']
    %8 = vsyncpa [#allocation4], 0
    %s9 = scalar_lea.sflag [#allocation4], 1
    %10 = vsyncpa %s9, 0
    %11 = vsyncpa [#allocation7], 0
    %s12 = scalar_lea.sflag [#allocation7], 1
    %13 = vsyncpa %s12, 0
    %14 = vsyncpa [#allocation5], 0
    %s15 = scalar_lea.sflag [#allocation5], 1
    %16 = vsyncpa %s15, 0
    loop: start=0, step=1, limit=6
    $region2: #{tpu_custom_call.1} parent=1 // loop_pre_header
      _
    $region3: #{tpu_custom_call.1} parent=1 // loop_header
      %s18 = sphi 0, %s22
      %p19 = scmp.ge.s32.totalorder %s18, 6
      %s25 = sphi 0, %s44
      %s26 = sphi 0, %s40
      %s27 = sphi 0, %s36
      %s28 = sphi 0, %s25
      %s29 = sphi 0, %s26
      %s30 = sphi 0, %s27
      %s31 = sphi 0, %s28
      %s32 = sphi 0, %s29
      %s33 = sphi 0, %s30
      %s49 = sphi 0, %s51
      %s52 = sphi 0, %s49
      %s53 = sphi 0, %s52
      %s69 = sphi 0, %s53
      %s77 = sphi 0, %s79
      %s80 = sphi 0, %s77
      %s81 = sphi 0, %s80
      %s97 = sphi 0, %s81
      %s103 = sphi 0, %s105
      %s106 = sphi 0, %s103
      %s107 = sphi 0, %s106
      %s123 = sphi 0, %s107
      %s131 = sphi 0, %s133
      %s134 = sphi 0, %s131
      %s135 = sphi 0, %s134
      %s151 = sphi 0, %s135
    $region4: #{tpu_custom_call.1} parent=1 // loop_header_branch
      %21 = sbr.rel (%p19) target = $region8
    $region5: #{tpu_custom_call.1} parent=1 // loop_body
      %s23 = ssub.s32 %s18, 1
      %s24 = ssub.s32 %s18, 2
      %s34 = sadd.s32 1, %s27
      %p35 = scmp.ge.s32.totalorder %s34, 2
      %s36 = scalar_select %p35, 0, %s34
      %s37 = sadd.s32 1, %s26
      %s38 = scalar_select %p35, %s37, %s26
      %p39 = scmp.ge.s32.totalorder %s38, 2
      %s40 = scalar_select %p39, 0, %s38
      %s41 = sadd.s32 1, %s25
      %s42 = scalar_select %p39, %s41, %s25
      %p43 = scmp.ge.s32.totalorder %s42, 1
      %s44 = scalar_select %p43, 0, %s42
      %s45 = ssub.s32 %s25, %s44
      %s46 = ssub.s32 %s27, %s36
      %s47 = sor.u32 %s45, %s46
      %p48 = scmp.eq.s32.totalorder %s47, 0
      %s50 = sadd.s32 %s49, 1
      %s51 = scalar_select %p48, %s49, %s50
      %p54 = pneg %p48
      %p55 = scmp.eq.s32.totalorder %s18, 3
      %p56 = por %p54, %p55
      %p57 = scmp.ne.s32.totalorder %s49, %s52
      %p58 = scmp.eq.s32.totalorder %s18, 0
      %p59 = por %p57, %p58
      %p60 = scmp.ne.s32.totalorder %s49, %s52
      %p61 = scmp.eq.s32.totalorder %s23, 3
      %p62 = por %p60, %p61
      %p63 = scmp.ne.s32.totalorder %s52, %s53
      %p64 = scmp.eq.s32.totalorder %s23, 0
      %p65 = por %p63, %p64
      %p66 = scmp.ne.s32.totalorder %s52, %s53
      %p67 = scmp.eq.s32.totalorder %s24, 3
      %p68 = por %p66, %p67
      %p70 = scmp.ne.s32.totalorder %s53, %s69
      %p71 = scmp.eq.s32.totalorder %s24, 0
      %p72 = por %p70, %p71
      %s73 = ssub.s32 %s26, %s40
      %s74 = ssub.s32 %s27, %s36
      %s75 = sor.u32 %s73, %s74
      %p76 = scmp.eq.s32.totalorder %s75, 0
      %s78 = sadd.s32 %s77, 1
      %s79 = scalar_select %p76, %s77, %s78
      %p82 = pneg %p76
      %p83 = scmp.eq.s32.totalorder %s18, 3
      %p84 = por %p82, %p83
      %p85 = scmp.ne.s32.totalorder %s77, %s80
      %p86 = scmp.eq.s32.totalorder %s18, 0
      %p87 = por %p85, %p86
      %p88 = scmp.ne.s32.totalorder %s77, %s80
      %p89 = scmp.eq.s32.totalorder %s23, 3
      %p90 = por %p88, %p89
      %p91 = scmp.ne.s32.totalorder %s80, %s81
      %p92 = scmp.eq.s32.totalorder %s23, 0
      %p93 = por %p91, %p92
      %p94 = scmp.ne.s32.totalorder %s80, %s81
      %p95 = scmp.eq.s32.totalorder %s24, 3
      %p96 = por %p94, %p95
      %p98 = scmp.ne.s32.totalorder %s81, %s97
      %p99 = scmp.eq.s32.totalorder %s24, 0
      %p100 = por %p98, %p99
      %s101 = ssub.s32 %s26, %s40
      %p102 = scmp.eq.s32.totalorder %s101, 0
      %s104 = sadd.s32 %s103, 1
      %s105 = scalar_select %p102, %s103, %s104
      %p108 = pneg %p102
      %p109 = scmp.eq.s32.totalorder %s18, 3
      %p110 = por %p108, %p109
      %p111 = scmp.ne.s32.totalorder %s103, %s106
      %p112 = scmp.eq.s32.totalorder %s18, 0
      %p113 = por %p111, %p112
      %p114 = scmp.ne.s32.totalorder %s103, %s106
      %p115 = scmp.eq.s32.totalorder %s23, 3
      %p116 = por %p114, %p115
      %p117 = scmp.ne.s32.totalorder %s106, %s107
      %p118 = scmp.eq.s32.totalorder %s23, 0
      %p119 = por %p117, %p118
      %p120 = scmp.ne.s32.totalorder %s106, %s107
      %p121 = scmp.eq.s32.totalorder %s24, 3
      %p122 = por %p120, %p121
      %p124 = scmp.ne.s32.totalorder %s107, %s123
      %p125 = scmp.eq.s32.totalorder %s24, 0
      %p126 = por %p124, %p125
      %s127 = ssub.s32 %s25, %s44
      %s128 = ssub.s32 %s26, %s40
      %s129 = sor.u32 %s127, %s128
      %p130 = scmp.eq.s32.totalorder %s129, 0
      %s132 = sadd.s32 %s131, 1
      %s133 = scalar_select %p130, %s131, %s132
      %p136 = pneg %p130
      %p137 = scmp.eq.s32.totalorder %s18, 3
      %p138 = por %p136, %p137
      %p139 = scmp.ne.s32.totalorder %s131, %s134
      %p140 = scmp.eq.s32.totalorder %s18, 0
      %p141 = por %p139, %p140
      %p142 = scmp.ne.s32.totalorder %s131, %s134
      %p143 = scmp.eq.s32.totalorder %s23, 3
      %p144 = por %p142, %p143
      %p145 = scmp.ne.s32.totalorder %s134, %s135
      %p146 = scmp.eq.s32.totalorder %s23, 0
      %p147 = por %p145, %p146
      %p148 = scmp.ne.s32.totalorder %s134, %s135
      %p149 = scmp.eq.s32.totalorder %s24, 3
      %p150 = por %p148, %p149
      %p152 = scmp.ne.s32.totalorder %s135, %s151
      %p153 = scmp.eq.s32.totalorder %s24, 0
      %p154 = por %p152, %p153
      %p155 = scmp.le.s32.totalorder 1, %s18
      %p156 = scmp.lt.s32.totalorder %s18, 5
      %p157 = pnand %p155, %p156
      %p158 = pneg %p157
      // Predicated region
      $region9: #{tpu_custom_call.1} parent=5 // pred_check
        _
      $region10: #{tpu_custom_call.1} parent=5 // pred_check_branch
        %160 = sbr.rel (%p157) target = $region12
      $region11: #{tpu_custom_call.1} parent=5 // pred_region
        %s161 = ssub.s32 %s18, 1
      $region12: #{tpu_custom_call.1} parent=5 // pred_fallthru
        _
      %p162 = scmp.lt.s32.totalorder %s18, 4
      // Predicated region
      $region13: #{tpu_custom_call.1} parent=5 // pred_check
        %p163 = pneg %p162
      $region14: #{tpu_custom_call.1} parent=5 // pred_check_branch
        %165 = sbr.rel (%p163) target = $region16
      $region15: #{tpu_custom_call.1} parent=5 // pred_region
        // Predicated region
        $region17: #{tpu_custom_call.1} parent=15 // pred_check
          %p166 = pneg %p59
        $region18: #{tpu_custom_call.1} parent=15 // pred_check_branch
          %168 = sbr.rel (%p166) target = $region20
        $region19: #{tpu_custom_call.1} parent=15 // pred_region
          %s169 = sand.u32 %s49, 1
          %s170 = scalar_lea.sflag [#allocation4], %s169
          %s171 = sand.u32 %s49, 1
          %s172 = smul.addr %s171, 8
          %s173 = scalar_lea.vmem [#allocation3], %s172
          %s174 = smul.u32 2, %s25
          %s175 = ssub.s32 1, %s174
          %s176 = smul.u32 64, %s175
          %s178 = ssub.s32 128, %s176
          %179 = vsyncadd %s170, %s178
          %p180 = scmp.ne.s32.totalorder 0, %s176
          %s181 = smul.addr %s174, 2
          %s182 = sadd.s32 %s27, %s181
          %s183 = smul.addr %s182, 64
          %s184 = scalar_lea.hbm %s0, %s183
          %s185 = smul.u32 4, %s175
          %s186 = sshll.u32 %s173, 4
          %s187 = int_to_ptr.vmem [resolvable:$true] %s186
          %s188 = sshll.u32 %s185, 4
          %192 = dma.hbm_to_vmem [thread:$0]  (%p180), %s184, %s188, %s187, %s170, 128, 64, 4
        $region20: #{tpu_custom_call.1} parent=15 // pred_fallthru
          _
        // Predicated region
        $region21: #{tpu_custom_call.1} parent=15 // pred_check
          %p193 = pneg %p87
        $region22: #{tpu_custom_call.1} parent=15 // pred_check_branch
          %195 = sbr.rel (%p193) target = $region24
        $region23: #{tpu_custom_call.1} parent=15 // pred_region
          %s196 = sand.u32 %s77, 1
          %s197 = scalar_lea.sflag [#allocation7], %s196
          %s198 = sand.u32 %s77, 1
          %s199 = smul.addr %s198, 64
          %s200 = scalar_lea.vmem [#allocation6], %s199
          %s201 = smul.u32 16, %s26
          %s203 = ssub.s32 1024, 1024
          %204 = vsyncadd %s197, %s203
          %s205 = smul.addr %s201, 2
          %s206 = sadd.s32 %s27, %s205
          %s207 = smul.addr %s206, 64
          %s208 = scalar_lea.hbm %s1, %s207
          %s209 = sshll.u32 %s200, 4
          %s210 = int_to_ptr.vmem [resolvable:$true] %s209
          %215 = dma.hbm_to_vmem [thread:$0]  %s208, 1024, %s210, %s197, 128, 64, 4
        $region24: #{tpu_custom_call.1} parent=15 // pred_fallthru
          _
        // Predicated region
        $region25: #{tpu_custom_call.1} parent=15 // pred_check
          %p216 = pneg %p113
        $region26: #{tpu_custom_call.1} parent=15 // pred_check_branch
          %218 = sbr.rel (%p216) target = $region28
        $region27: #{tpu_custom_call.1} parent=15 // pred_region
          %p219 = scmp.lt.s32.totalorder %s26, 1
          %s220 = scalar_select %p219, %s26, 1
          %s221 = scalar_lea.vmem %s2, %s220
        $region28: #{tpu_custom_call.1} parent=15 // pred_fallthru
          _
      $region16: #{tpu_custom_call.1} parent=5 // pred_fallthru
        _
      %p222 = scmp.le.s32.totalorder 1, %s18
      %p223 = scmp.lt.s32.totalorder %s18, 5
      %p224 = pnand %p222, %p223
      %p225 = pneg %p224
      // Predicated region
      $region29: #{tpu_custom_call.1} parent=5 // pred_check
        _
      $region30: #{tpu_custom_call.1} parent=5 // pred_check_branch
        %227 = sbr.rel (%p224) target = $region32
      $region31: #{tpu_custom_call.1} parent=5 // pred_region
        %s228 = ssub.s32 %s18, 1
        %s229 = sand.u32 %s52, 1
        %s230 = scalar_lea.sflag [#allocation4], %s229
        %s231 = sand.u32 %s52, 1
        %s232 = smul.addr %s231, 8
        %s233 = scalar_lea.vmem [#allocation3], %s232
        // Predicated region
        $region33: #{tpu_custom_call.1} parent=31 // pred_check
          %p234 = pneg %p65
        $region34: #{tpu_custom_call.1} parent=31 // pred_check_branch
          %236 = sbr.rel (%p234) target = $region36
        $region35: #{tpu_custom_call.1} parent=31 // pred_region
          %237 = dma.done %s230, 128
        $region36: #{tpu_custom_call.1} parent=31 // pred_fallthru
          _
        %s238 = sand.u32 %s80, 1
        %s239 = scalar_lea.sflag [#allocation7], %s238
        %s240 = sand.u32 %s80, 1
        %s241 = smul.addr %s240, 64
        %s242 = scalar_lea.vmem [#allocation6], %s241
        // Predicated region
        $region37: #{tpu_custom_call.1} parent=31 // pred_check
          %p243 = pneg %p93
        $region38: #{tpu_custom_call.1} parent=31 // pred_check_branch
          %245 = sbr.rel (%p243) target = $region40
        $region39: #{tpu_custom_call.1} parent=31 // pred_region
          %246 = dma.done %s239, 1024
        $region40: #{tpu_custom_call.1} parent=31 // pred_fallthru
          _
        %s247 = sand.u32 %s52, 1
        %s248 = scalar_lea.sflag [#allocation4], %s247
        %s249 = sand.u32 %s52, 1
        %s250 = smul.addr %s249, 8
        %s251 = scalar_lea.vmem [#allocation3], %s250
        %p252 = pneg %p65
        %p253 = pneg %p62
        %s254 = sand.u32 %s80, 1
        %s255 = scalar_lea.sflag [#allocation7], %s254
        %s256 = sand.u32 %s80, 1
        %s257 = smul.addr %s256, 64
        %s258 = scalar_lea.vmem [#allocation6], %s257
        %p259 = pneg %p93
        %p260 = pneg %p90
        %p261 = scmp.lt.s32.totalorder %s29, 1
        %s262 = scalar_select %p261, %s29, 1
        %s263 = scalar_lea.vmem %s2, %s262
        %p264 = pneg %p119
        %p265 = pneg %p116
        %p266 = pneg %p147
        %p267 = pneg %p144
        %s268 = sand.u32 %s134, 1
        %s269 = scalar_lea.sflag [#allocation5], %s268
        %s270 = sand.u32 %s134, 1
        %s271 = smul.addr %s270, 16
        %s272 = scalar_lea.vmem [#allocation8], %s271
        %s273 = smul.u32 2, %s28
        %s274 = ssub.s32 1, %s273
        %s275 = smul.u32 64, %s274
        %s276 = smul.u32 16, %s29
        %p277 = scmp.lt.s32.totalorder %s29, 1
        %s278 = scalar_select %p277, %s29, 1
        %s279 = scalar_lea.vmem %s2, %s278
        %s280 = smul.u32 2, %s28
        %s281 = ssub.s32 1, %s280
        %s282 = smul.u32 128, %s281
        %p284 = scmp.eq.s32.totalorder %s30, 0
        // Predicated region
        $region41: #{tpu_custom_call.1} parent=31 // pred_check
          %p285 = pneg %p284
        $region42: #{tpu_custom_call.1} parent=31 // pred_check_branch
          %287 = sbr.rel (%p285) target = $region44
        $region43: #{tpu_custom_call.1} parent=31 // pred_region
          %288 = vst [vmem:[#allocation2] sm:$0xff] 0.0
          %289 = vst [vmem:[#allocation2 + $0x8] sm:$0xff] 0.0
        $region44: #{tpu_custom_call.1} parent=31 // pred_fallthru
          _
        %v290 = vld [vmem:[#allocation2] sm:$0xff]
        %v291 = vld [vmem:[#allocation2 + $0x8] sm:$0xff]
        %v292 = vld [vmem:[%s233] sm:$0xf]
        %v293 = vld [vmem:[%s233 + $0x4] sm:$0xf]
        %v294 = vld [vmem:[%s242] sm:$0xf]
        %v295 = vld [vmem:[%s242 + $0x4] sm:$0xf]
        %v296 = vld [vmem:[%s242 + $0x8] sm:$0xf]
        %v297 = vld [vmem:[%s242 + $0xc] sm:$0xf]
        %v298 = vld [vmem:[%s242 + $0x10] sm:$0xf]
        %v299 = vld [vmem:[%s242 + $0x14] sm:$0xf]
        %v300 = vld [vmem:[%s242 + $0x18] sm:$0xf]
        %v301 = vld [vmem:[%s242 + $0x1c] sm:$0xf]
        %v302 = vld [vmem:[%s242 + $0x20] sm:$0xf]
        %v303 = vld [vmem:[%s242 + $0x24] sm:$0xf]
        %v304 = vld [vmem:[%s242 + $0x28] sm:$0xf]
        %v305 = vld [vmem:[%s242 + $0x2c] sm:$0xf]
        %v306 = vld [vmem:[%s242 + $0x30] sm:$0xf]
        %v307 = vld [vmem:[%s242 + $0x34] sm:$0xf]
        %v308 = vld [vmem:[%s242 + $0x38] sm:$0xf]
        %v309 = vld [vmem:[%s242 + $0x3c] sm:$0xf]
        %v312 = vunpack.c.l.b16 %v292
        %v313 = vunpack.c.l.b16 %v293
        %v314 = vpack.c.b16 %v313, %v312
        %v332 = vunpack.c.l.b16 %v294
        %v333 = vunpack.c.l.b16 %v295
        %v334 = vunpack.c.l.b16 %v296
        %v335 = vunpack.c.l.b16 %v297
        %v336 = vunpack.c.l.b16 %v298
        %v337 = vunpack.c.l.b16 %v299
        %v338 = vunpack.c.l.b16 %v300
        %v339 = vunpack.c.l.b16 %v301
        %v340 = vunpack.c.l.b16 %v302
        %v341 = vunpack.c.l.b16 %v303
        %v342 = vunpack.c.l.b16 %v304
        %v343 = vunpack.c.l.b16 %v305
        %v344 = vunpack.c.l.b16 %v306
        %v345 = vunpack.c.l.b16 %v307
        %v346 = vunpack.c.l.b16 %v308
        %v347 = vunpack.c.l.b16 %v309
        %v348 = vpack.c.b16 %v333, %v332
        %v349 = vpack.c.b16 %v335, %v334
        %v350 = vpack.c.b16 %v337, %v336
        %v351 = vpack.c.b16 %v339, %v338
        %v352 = vpack.c.b16 %v341, %v340
        %v353 = vpack.c.b16 %v343, %v342
        %v354 = vpack.c.b16 %v345, %v344
        %v355 = vpack.c.b16 %v347, %v346
        %364 = vmatprep.subr.bf16.mxu0 0
        %365 = vmatpush1.bf16.xpose.msra.mxu0 %v348
        %366 = vmatprep.subr.bf16.mxu0 0
        %367 = vmatpush1.bf16.xpose.msra.mxu0 %v349
        %368 = vmatprep.subr.bf16.mxu0 0
        %369 = vmatpush1.bf16.xpose.msra.mxu0 %v350
        %370 = vmatprep.subr.bf16.mxu0 0
        %371 = vmatpush1.bf16.xpose.msra.mxu0 %v351
        %372 = vmatprep.subr.bf16.mxu0 0
        %373 = vmatpush1.bf16.xpose.msra.mxu0 %v352
        %374 = vmatprep.subr.bf16.mxu0 0
        %375 = vmatpush1.bf16.xpose.msra.mxu0 %v353
        %376 = vmatprep.subr.bf16.mxu0 0
        %377 = vmatpush1.bf16.xpose.msra.mxu0 %v354
        %378 = vmatprep.subr.bf16.mxu0 0
        %379 = vmatpush1.bf16.xpose.msra.mxu0 %v355
        %380 = vmatprep.subr.bf16.mxu0 0
        %381 = vmatpush1.bf16.xpose.msra.mxu0 0
        %382 = vmatprep.subr.bf16.mxu0 0
        %383 = vmatpush1.bf16.xpose.msra.mxu0 0
        %384 = vmatprep.subr.bf16.mxu0 0
        %385 = vmatpush1.bf16.xpose.msra.mxu0 0
        %386 = vmatprep.subr.bf16.mxu0 0
        %387 = vmatpush1.bf16.xpose.msra.mxu0 0
        %388 = vmatprep.subr.bf16.mxu0 0
        %389 = vmatpush1.bf16.xpose.msra.mxu0 0
        %390 = vmatprep.subr.bf16.mxu0 0
        %391 = vmatpush1.bf16.xpose.msra.mxu0 0
        %392 = vmatprep.subr.bf16.mxu0 0
        %393 = vmatpush1.bf16.xpose.msra.mxu0 0
        %394 = vmatprep.subr.bf16.mxu0 0
        %395 = vmatpush1.bf16.xpose.msra.mxu0 0
        %396 = vmatprep.mubr.bf16.mxu0 0
        %397 = vmatmul.mubr.bf16.gmra.mrb[0].mxu0 %v314
        %v398 = vpop.f32.mrb[0].mxu0
        %v399 = vadd.f32 0.0, %v398
        %v400 = vpop.f32.mrb[0].mxu0
        %v401 = vpop.f32.mrb[0].mxu0
        %v402 = vadd.f32 0.0, %v401
        %v403 = vpop.f32.mrb[0].mxu0
        %404 = vdwg.mxu0
        %v405 = vadd.f32 %v290, %v399
        %v406 = vadd.f32 %v291, %v402
        %407 = vst [vmem:[#allocation2] sm:$0xff] %v405
        %408 = vst [vmem:[#allocation2 + $0x8] sm:$0xff] %v406
        %p409 = scmp.eq.s32.totalorder %s30, 1
        // Predicated region
        $region45: #{tpu_custom_call.1} parent=31 // pred_check
          %p410 = pneg %p409
        $region46: #{tpu_custom_call.1} parent=31 // pred_check_branch
          %412 = sbr.rel (%p410) target = $region48
        $region47: #{tpu_custom_call.1} parent=31 // pred_region
          %v413 = vld [vmem:[#allocation2] sm:$0xff]
          %v414 = vld [vmem:[#allocation2 + $0x8] sm:$0xff]
          %v415 = vld [vmem:[%s279] sm:$0x1]
          %v417 = vlaneseq
          %v418 = vshrl.u32 %v417, 7
          %v419 = vsub.s32 0, %v418
          %v420 = vrot.slane %v415, %v419
          %v422 = vadd.f32 %v413, %v420
          %v423 = vadd.f32 %v414, %v420
          %424 = vst [vmem:[%s272] sm:$0xff] %v422
          %425 = vst [vmem:[%s272 + $0x8] sm:$0xff] %v423
        $region48: #{tpu_custom_call.1} parent=31 // pred_fallthru
          _
        %s426 = sand.u32 %s134, 1
        %s427 = scalar_lea.sflag [#allocation5], %s426
        %s428 = sand.u32 %s134, 1
        %s429 = smul.addr %s428, 16
        %s430 = scalar_lea.vmem [#allocation8], %s429
        // Predicated region
        $region49: #{tpu_custom_call.1} parent=31 // pred_check
          %p431 = pneg %p144
        $region50: #{tpu_custom_call.1} parent=31 // pred_check_branch
          %433 = sbr.rel (%p431) target = $region52
        $region51: #{tpu_custom_call.1} parent=31 // pred_region
          %s434 = smul.u32 2, %s28
          %s435 = ssub.s32 1, %s434
          %s436 = smul.u32 128, %s435
          %s438 = ssub.s32 256, %s436
          %439 = vsyncadd %s427, %s438
          %p440 = scmp.ne.s32.totalorder 0, %s436
          %s441 = smul.addr %s434, 2
          %s442 = sadd.s32 %s29, %s441
          %s443 = smul.addr %s442, 128
          %s444 = scalar_lea.hbm %s3, %s443
          %s445 = smul.u32 8, %s435
          %s446 = sshll.u32 %s430, 4
          %s447 = int_to_ptr.vmem [resolvable:$true] %s446
          %s448 = sshll.u32 %s445, 4
          %452 = dma.vmem_to_hbm [thread:$0]  (%p440), %s447, %s448, %s444, %s427, 128, 256, 8
        $region52: #{tpu_custom_call.1} parent=31 // pred_fallthru
          _
      $region32: #{tpu_custom_call.1} parent=5 // pred_fallthru
        _
      %p453 = scmp.le.s32.totalorder 2, %s18
      // Predicated region
      $region53: #{tpu_custom_call.1} parent=5 // pred_check
        %p454 = pneg %p453
      $region54: #{tpu_custom_call.1} parent=5 // pred_check_branch
        %456 = sbr.rel (%p454) target = $region56
      $region55: #{tpu_custom_call.1} parent=5 // pred_region
        %s457 = ssub.s32 %s18, 2
        // Predicated region
        $region57: #{tpu_custom_call.1} parent=55 // pred_check
          %p458 = pneg %p150
        $region58: #{tpu_custom_call.1} parent=55 // pred_check_branch
          %460 = sbr.rel (%p458) target = $region60
        $region59: #{tpu_custom_call.1} parent=55 // pred_region
          %s461 = sand.u32 %s135, 1
          %s462 = scalar_lea.sflag [#allocation5], %s461
          %s463 = sand.u32 %s135, 1
          %s464 = smul.addr %s463, 16
          %s465 = scalar_lea.vmem [#allocation8], %s464
          %466 = dma.done %s462, 256
        $region60: #{tpu_custom_call.1} parent=55 // pred_fallthru
          _
      $region56: #{tpu_custom_call.1} parent=5 // pred_fallthru
        _
    $region6: #{tpu_custom_call.1} parent=1 // loop_footer
      %s22 = sadd.s32 1, %s18
    $region7: #{tpu_custom_call.1} parent=1 // loop_footer_branch
      %17 = sbr.rel target = $region3
    $region8: #{tpu_custom_call.1} parent=1 // loop_exit
      _
    %467 = vsyncpa [#allocation4], 1
    %s468 = scalar_lea.sflag [#allocation4], 1
    %469 = vsyncpa %s468, 1
    %470 = vsyncpa [#allocation7], 1
    %s471 = scalar_lea.sflag [#allocation7], 1
    %472 = vsyncpa %s471, 1
    %473 = vsyncpa [#allocation5], 1
    %s474 = scalar_lea.sflag [#allocation5], 1
    %475 = vsyncpa %s474, 1

</llo_original>
